<compile_context>
chip_gen: v7x
topology: tpu7x:2x2x1
jax: 0.10.0
libtpu: 0.0.40
codegen_flags: <defaults>
</compile_context>

<pallas_src>
import jax
import jax.numpy as jnp
from jax.experimental import pallas as pl
from jax.experimental.pallas import tpu as pltpu

_LANE = 128


def _h_swish_kernel(x_ref, o_ref):
    x = x_ref[...]
    # h_swish(x) = x * ReLU6(x + 3) / 6   (all math stays in the input dtype)
    y = x * (jnp.clip(x + 3.0, 0.0, 6.0) / 6.0)
    o_ref[...] = y.astype(o_ref.dtype)


def _sublane_base(dtype):
    itemsize = jnp.dtype(dtype).itemsize
    if itemsize >= 4:
        return 8
    if itemsize == 2:
        return 16
    return 32


def h_swish(x, *, lane_cols=2048, target_block_bytes=2 * 1024 * 1024):
    """Fused elementwise hard-swish: x * ReLU6(x+3)/6. Accepts any-rank input."""
    orig_shape = x.shape
    dtype = x.dtype
    total = int(x.size)
    if total == 0:
        return x
    itemsize = jnp.dtype(dtype).itemsize

    # --- lane-dense 2D layout ------------------------------------------------
    # Prefer a column count (multiple of 128) that exactly divides the element
    # count so the reshape is a free metadata change (no pad/slice HBM passes).
    cols = None
    c = lane_cols
    while c >= _LANE:
        if total % c == 0:
            cols = c
            break
        c //= 2
    needs_pad = cols is None
    if needs_pad:
        cols = lane_cols if total >= lane_cols else (_LANE if total >= _LANE else total)

    rows = pl.cdiv(total, cols)
    padded_total = rows * cols

    flat = x.reshape(-1)
    if padded_total != total:
        flat = jnp.pad(flat, (0, padded_total - total))
    x2d = flat.reshape(rows, cols)

    # --- dtype-aware, byte-budgeted row block (~target_block_bytes / block) ---
    base = _sublane_base(dtype)
    row_block = max(base, (target_block_bytes // (cols * itemsize)) // base * base)
    if row_block >= rows:
        row_block = rows  # block equals full array extent along rows (allowed)

    grid = (pl.cdiv(rows, row_block),)  # ragged last block is masked by Pallas

    out2d = pl.pallas_call(
        _h_swish_kernel,
        out_shape=jax.ShapeDtypeStruct((rows, cols), dtype),
        grid_spec=pltpu.PrefetchScalarGridSpec(
            num_scalar_prefetch=0,
            grid=grid,
            in_specs=[pl.BlockSpec((row_block, cols), lambda i: (i, 0))],
            out_specs=pl.BlockSpec((row_block, cols), lambda i: (i, 0)),
        ),
        compiler_params=pltpu.CompilerParams(
            dimension_semantics=("parallel",),
        ),
    )(x2d)

    out = out2d.reshape(-1)
    if padded_total != total:
        out = out[:total]
    return out.reshape(orig_shape)


def _ref_h_swish(x):
    return x * (jnp.clip(x + 3.0, 0.0, 6.0) / 6.0)


if __name__ == "__main__":
    key = jax.random.PRNGKey(0)

    # Primary case: NCHW, batch=2, channels=4, spatial=16x16, f32 (copy-free path).
    x = jax.random.normal(key, (2, 4, 16, 16), dtype=jnp.float32) * 4.0
    y = jax.block_until_ready(h_swish(x))
    assert y.shape == x.shape and y.dtype == x.dtype
    assert jnp.allclose(y, _ref_h_swish(x), atol=1e-6), "f32 mismatch vs reference"

    # Odd element count (not a multiple of 128) -> exercises the padding path.
    x2 = jax.random.normal(jax.random.PRNGKey(1), (3, 5, 7, 7), dtype=jnp.float32) * 4.0
    y2 = jax.block_until_ready(h_swish(x2))
    assert jnp.allclose(y2, _ref_h_swish(x2), atol=1e-6), "odd-shape mismatch"

    # bf16 case -> exercises the dtype-aware sublane block.
    x3 = (jax.random.normal(jax.random.PRNGKey(2), (2, 8, 14, 14), dtype=jnp.float32)
          * 4.0).astype(jnp.bfloat16)
    y3 = jax.block_until_ready(h_swish(x3))
    assert y3.dtype == jnp.bfloat16
    assert jnp.allclose(y3.astype(jnp.float32),
                        _ref_h_swish(x3).astype(jnp.float32),
                        atol=3e-2), "bf16 mismatch vs reference"

    # Larger case -> exercises the multi-block grid with a ragged last block.
    x4 = jax.random.normal(jax.random.PRNGKey(3), (5, 128, 32, 64), dtype=jnp.float32) * 4.0
    y4 = jax.block_until_ready(h_swish(x4))
    assert jnp.allclose(y4, _ref_h_swish(x4), atol=1e-6), "multi-block mismatch"

    print("KERNEL_OK")
</pallas_src>

<mosaic_0001>
module attributes {stable_mosaic.version = 11 : i64} {
  func.func @_h_swish_kernel(%arg0: i32, %arg1: memref<1x2048xf32, #tpu.memory_space<vmem>>, %arg2: memref<1x2048xf32, #tpu.memory_space<vmem>>) attributes {dimension_semantics = [#tpu.dimension_semantics<parallel>], iteration_bounds = array<i64: 1>, scalar_prefetch = 0 : i64, scratch_operands = 0 : i64, tpu.core_type = #tpu.core_type<tc>, window_params = [{transform_indices = @transform_0, window_bounds = array<i64: 1, 2048>}, {transform_indices = @transform_1, window_bounds = array<i64: 1, 2048>}]} {
    %c0 = arith.constant 0 : index
    %c0_0 = arith.constant 0 : index
    %0 = vector.load %arg1[%c0, %c0_0] : memref<1x2048xf32, #tpu.memory_space<vmem>>, vector<1x2048xf32>
    %cst = arith.constant 3.000000e+00 : f32
    %1 = vector.broadcast %cst : f32 to vector<1x2048xf32>
    %2 = arith.addf %0, %1 : vector<1x2048xf32>
    %cst_1 = arith.constant 0.000000e+00 : f32
    %cst_2 = arith.constant 6.000000e+00 : f32
    %3 = vector.broadcast %cst_1 : f32 to vector<1x2048xf32>
    %4 = arith.maximumf %3, %2 : vector<1x2048xf32>
    %5 = vector.broadcast %cst_2 : f32 to vector<1x2048xf32>
    %6 = arith.minimumf %5, %4 : vector<1x2048xf32>
    %cst_3 = arith.constant 6.000000e+00 : f32
    %7 = vector.broadcast %cst_3 : f32 to vector<1x2048xf32>
    %8 = arith.divf %6, %7 : vector<1x2048xf32>
    %9 = arith.mulf %0, %8 : vector<1x2048xf32>
    %c0_4 = arith.constant 0 : index
    %c0_5 = arith.constant 0 : index
    %10 = vector.load %arg2[%c0_4, %c0_5] : memref<1x2048xf32, #tpu.memory_space<vmem>>, vector<1x2048xf32>
    tpu.vector_store %arg2[%c0_4, %c0_5], %9 {strides = array<i32>} : memref<1x2048xf32, #tpu.memory_space<vmem>>, vector<1x2048xf32>,
    return
  }
  func.func @transform_0(%arg0: i32) -> (i32, i32) {
    %c0_i32 = arith.constant 0 : i32
    %c0_i32_0 = arith.constant 0 : i32
    return %arg0, %c0_i32 : i32, i32
  }
  func.func @transform_1(%arg0: i32) -> (i32, i32) {
    %c0_i32 = arith.constant 0 : i32
    %c0_i32_0 = arith.constant 0 : i32
    return %arg0, %c0_i32 : i32, i32
  }
}

</mosaic_0001>

<llo_original>
// kernel: tpu_custom_call.1
$region0: #{tpu_custom_call.1}
  #allocation0 [shape = 'u32[]', space=smem, size = 0x4, offset = 0x4, fixed_abs, tag = 'smem constant byte address 0x4 - core index']
  #allocation1 [shape = 'u32[144,128]{1,0:T(1,128)}', space=vmem, size = 0x12000, scoped, tag = 'internal scratch']
  %s0 = inlined_call_operand.hbm [shape: f32[1,2048], index: 0, kind: input, shape index: {}]
  %s1 = inlined_call_operand.hbm [shape: f32[1,2048], index: 1, kind: output, shape index: {}]
  %s2 = sld [smem:[#allocation0]]
  $region18: #{tpu_custom_call.1} parent=0
    _
  %s4 = ssub.s32 1, %s2
  %s5 = scalar_select 0, %s4, %s2
  $region1: #{tpu_custom_call.1} parent=0
    #allocation2 [shape = 'u8[8192]{0}', space=vmem, size = 0x2000, scoped, tag = 'input window, operand 0, single buffered']
    #allocation3 [shape = 's32[1]{0}', space=sflag, size = 0x4, scoped, tag = 'scoped memory for tpu_custom_call.1']
    #allocation4 [shape = 's32[1]{0}', space=sflag, size = 0x4, scoped, tag = 'scoped memory for tpu_custom_call.1']
    #allocation5 [shape = 'u8[8192]{0}', space=vmem, size = 0x2000, scoped, tag = 'output window, operand 0, single buffered']
    %6 = vsyncpa [#allocation3], 0
    %7 = vsyncpa [#allocation4], 0
    // Predicated region
    $region2: #{tpu_custom_call.1} parent=1 // pred_check
      _
    $region3: #{tpu_custom_call.1} parent=1 // pred_check_branch
      %9 = sbr.rel (0) target = $region5
    $region4: #{tpu_custom_call.1} parent=1 // pred_region
      %s11 = ssub.s32 256, 256
      %12 = vsyncadd [#allocation3], %s11
      %s14 = sshll.u32 [#allocation2], 4
      %s15 = int_to_ptr.vmem [resolvable:$true] %s14
      %17 = dma.hbm_to_vmem [thread:$0]  %s0, 256, %s15, [#allocation3]
    $region5: #{tpu_custom_call.1} parent=1 // pred_fallthru
      _
    // Predicated region
    $region6: #{tpu_custom_call.1} parent=1 // pred_check
      _
    $region7: #{tpu_custom_call.1} parent=1 // pred_check_branch
      %19 = sbr.rel (0) target = $region9
    $region8: #{tpu_custom_call.1} parent=1 // pred_region
      %20 = dma.done [#allocation3], 256
    $region9: #{tpu_custom_call.1} parent=1 // pred_fallthru
      _
    %v21 = vld [vmem:[#allocation2] sm:$0xff]
    %v22 = vld [vmem:[#allocation2 + $0x8] sm:$0xff]
    %v23 = vadd.f32 %v21, 3.0
    %v24 = vadd.f32 %v22, 3.0
    %v25 = vmax.f32 %v23, 0.0
    %v26 = vmax.f32 %v24, 0.0
    %v27 = vmin.f32 %v25, 6.0
    %v28 = vmin.f32 %v26, 6.0
    %v29 = vrcp.pop 6.0
    %v30 = vmul.f32 %v27, %v29
    %v31 = vmul.f32 %v28, %v29
    %v32 = vmul.f32 %v21, %v30
    %v33 = vmul.f32 %v22, %v31
    %34 = vst [vmem:[#allocation5] sm:$0xff] %v32
    %35 = vst [vmem:[#allocation5 + $0x8] sm:$0xff] %v33
    // Predicated region
    $region10: #{tpu_custom_call.1} parent=1 // pred_check
      _
    $region11: #{tpu_custom_call.1} parent=1 // pred_check_branch
      %37 = sbr.rel (0) target = $region13
    $region12: #{tpu_custom_call.1} parent=1 // pred_region
      %s39 = ssub.s32 256, 256
      %40 = vsyncadd [#allocation4], %s39
      %s42 = sshll.u32 [#allocation5], 4
      %s43 = int_to_ptr.vmem [resolvable:$true] %s42
      %45 = dma.vmem_to_hbm [thread:$0]  %s43, 256, %s1, [#allocation4]
    $region13: #{tpu_custom_call.1} parent=1 // pred_fallthru
      _
    // Predicated region
    $region14: #{tpu_custom_call.1} parent=1 // pred_check
      _
    $region15: #{tpu_custom_call.1} parent=1 // pred_check_branch
      %47 = sbr.rel (0) target = $region17
    $region16: #{tpu_custom_call.1} parent=1 // pred_region
      %48 = dma.done [#allocation4], 256
    $region17: #{tpu_custom_call.1} parent=1 // pred_fallthru
      _
    %49 = vsyncpa [#allocation3], 1
    %50 = vsyncpa [#allocation4], 1

</llo_original>
